<compile_context>
chip_gen: v7x
topology: tpu7x:2x2x1
jax: 0.10.0
libtpu: 0.0.40
codegen_flags: <defaults>
</compile_context>

<pallas_src>
import functools
import math

import numpy as np
import jax
import jax.numpy as jnp
from jax.experimental import pallas as pl
from jax.experimental.pallas import tpu as pltpu


def _round_up(x, m):
    return ((x + m - 1) // m) * m


# --------------------------------------------------------------------------
# Pallas kernels
# --------------------------------------------------------------------------
def _roi_align_kernel(bidx_ref, wy_ref, wx_ref, feat_ref, o_ref, *, P, W, C, PC_PAD):
    # Per-ROI: wy (1,P,H) bf16, wx (1,P,W) bf16, feat (1,H,W*C) bf16 (batch-selected via
    # the scalar-prefetched batch index in the feature index_map).
    del bidx_ref  # only used by the index_maps
    wy = wy_ref[0]                                                  # (P, H)
    feat = feat_ref[0]                                              # (H, W*C)
    t = jnp.dot(wy, feat, preferred_element_type=jnp.float32)       # (P, W*C)  MXU
    t3 = t.reshape(P, W, C).astype(jnp.bfloat16)
    wx = wx_ref[0]                                                  # (P, W)
    wxb = jnp.broadcast_to(wx[None, :, :], (P, P, W))               # (py, px, w) small
    o = jnp.einsum("ypw,ywc->ypc", wxb, t3,
                   preferred_element_type=jnp.float32)              # (P, P, C)
    o2 = o.reshape(P, P * C)
    if PC_PAD > P * C:                                              # lane-dense padded row
        o2 = jnp.concatenate(
            [o2, jnp.zeros((P, PC_PAD - P * C), o2.dtype)], axis=1)
    o_ref[0] = o2.astype(o_ref.dtype)                               # (P, PC_PAD)


def _box_head_kernel(pooled_ref, fc6w_ref, fc6b_ref, fc7w_ref, fc7b_ref,
                     headw_ref, headb_ref, prop_ref, imwh_ref, out_ref,
                     *, G, weights, clip):
    # Fused: fc6 -> relu -> fc7 -> relu -> (cls|bbox) -> box decode -> clip -> softmax.
    # All column groups are G(=128k)-lane aligned; stores are lane-dense slabs.
    x3 = pooled_ref[...]                                            # (T, P, PC_PAD) bf16
    x = x3.reshape(x3.shape[0], x3.shape[1] * x3.shape[2])
    h = jnp.dot(x, fc6w_ref[...], preferred_element_type=jnp.float32) + fc6b_ref[...]
    h = jnp.maximum(h, 0.0).astype(jnp.bfloat16)
    h = jnp.dot(h, fc7w_ref[...], preferred_element_type=jnp.float32) + fc7b_ref[...]
    h = jnp.maximum(h, 0.0).astype(jnp.bfloat16)
    y = jnp.dot(h, headw_ref[...], preferred_element_type=jnp.float32) + headb_ref[...]

    logits = y[:, 0:G]                                              # 128-aligned views
    ddx = y[:, G:2 * G]
    ddy = y[:, 2 * G:3 * G]
    ddw = y[:, 3 * G:4 * G]
    ddh = y[:, 4 * G:5 * G]

    p = prop_ref[...]                                               # (T, 4) f32
    px1 = p[:, 0:1]
    py1 = p[:, 1:2]
    px2 = p[:, 2:3]
    py2 = p[:, 3:4]
    w = px2 - px1
    hh = py2 - py1
    cx = px1 + 0.5 * w
    cy = py1 + 0.5 * hh

    wx_, wy_, ww_, wh_ = weights
    ddx = ddx / wx_
    ddy = ddy / wy_
    ddw = jnp.minimum(ddw / ww_, clip)
    ddh = jnp.minimum(ddh / wh_, clip)
    pcx = ddx * w + cx
    pcy = ddy * hh + cy
    pw = jnp.exp(ddw) * w
    ph = jnp.exp(ddh) * hh

    imw = imwh_ref[:, 0:1]
    imh = imwh_ref[:, 1:2]
    out_ref[:, 0:G] = jnp.clip(pcx - 0.5 * pw, 0.0, imw)
    out_ref[:, G:2 * G] = jnp.clip(pcy - 0.5 * ph, 0.0, imh)
    out_ref[:, 2 * G:3 * G] = jnp.clip(pcx + 0.5 * pw, 0.0, imw)
    out_ref[:, 3 * G:4 * G] = jnp.clip(pcy + 0.5 * ph, 0.0, imh)

    m = jnp.max(logits, axis=-1, keepdims=True)                     # padded cols carry -1e9 bias
    e = jnp.exp(logits - m)
    out_ref[:, 4 * G:5 * G] = e / jnp.sum(e, axis=-1, keepdims=True)


def _mask_head_kernel(x_ref, w1_ref, b1_ref, w2_ref, b2_ref, wde_ref, bde_ref,
                      wlg_ref, blg_ref, logit_ref, prob_ref,
                      *, Rb, M, C, C1, C2, C3, NCp):
    # x: (Rb, M, M*C | pad) bf16.  Fused: halo-pad -> conv3x3+relu -> conv3x3+relu ->
    # deconv2x2(s2)+relu -> conv1x1 -> sigmoid.  Each conv = ONE matmul (im2col concat, K=9*C).
    H2 = M + 2
    W2 = M + 2
    x = x_ref[...][:, :, :M * C]                                    # strip lane padding

    # In-kernel zero halo pad by 2 (same-padding for two 3x3 convs), via minor-axis concats.
    x2 = x.reshape(Rb * M, M * C)
    zc = jnp.zeros((Rb * M, 2 * C), x2.dtype)
    x2 = jnp.concatenate([zc, x2, zc], axis=1)                      # (Rb*M, (M+4)*C)
    x3 = x2.reshape(Rb, M * (M + 4) * C)
    zr = jnp.zeros((Rb, 2 * (M + 4) * C), x2.dtype)
    x3 = jnp.concatenate([zr, x3, zr], axis=1)
    xp = x3.reshape(Rb, M + 4, M + 4, C)

    # conv1: valid 3x3 over the 2-padded input as ONE matmul (K = 9*C); zero the outer ring so
    # the result is exactly the 1-zero-padded input of conv2.
    taps1 = [xp[:, dy:dy + H2, dx:dx + W2, :].reshape(Rb * H2 * W2, C)
             for dy in range(3) for dx in range(3)]
    v1 = jnp.concatenate(taps1, axis=1)                             # (Rb*H2*W2, 9*C)
    y1 = jnp.dot(v1, w1_ref[...], preferred_element_type=jnp.float32) + b1_ref[...]
    y1 = jnp.maximum(y1, 0.0).reshape(Rb, H2, W2, C1)
    row = jax.lax.broadcasted_iota(jnp.int32, (H2, W2), 0)
    col = jax.lax.broadcasted_iota(jnp.int32, (H2, W2), 1)
    interior = (row > 0) & (row < H2 - 1) & (col > 0) & (col < W2 - 1)
    y1 = jnp.where(interior[None, :, :, None], y1, 0.0).astype(jnp.bfloat16)

    # conv2: valid 3x3 -> (Rb, M, M, C2), again ONE matmul.
    taps2 = [y1[:, dy:dy + M, dx:dx + M, :].reshape(Rb * M * M, C1)
             for dy in range(3) for dx in range(3)]
    v2 = jnp.concatenate(taps2, axis=1)                             # (Rb*M*M, 9*C1)
    hfeat = jnp.maximum(
        jnp.dot(v2, w2_ref[...], preferred_element_type=jnp.float32) + b2_ref[...],
        0.0).astype(jnp.bfloat16)                                   # (Rb*M*M, C2)

    # deconv 2x2 stride 2 as a single matmul (columns ordered (ky, kx, c)).
    d = jnp.dot(hfeat, wde_ref[...], preferred_element_type=jnp.float32) + bde_ref[...]
    d = jnp.maximum(d, 0.0).astype(jnp.bfloat16)                    # (Rb*M*M, 4*C3)
    d = d.reshape(Rb * M * M * 4, C3)

    # 1x1 conv + fused sigmoid epilogue; lane-dense (NCp-padded) output slabs.
    lg = jnp.dot(d, wlg_ref[...], preferred_element_type=jnp.float32) + blg_ref[...]
    pr = jax.nn.sigmoid(lg)
    logit_ref[...] = lg.reshape(Rb * M, M * 4 * NCp)
    prob_ref[...] = pr.reshape(Rb * M, M * 4 * NCp)


# --------------------------------------------------------------------------
# RoIAlign wrapper (bilinear weights built in JAX glue, contractions in Pallas)
# --------------------------------------------------------------------------
def _interp_matrix(start, bin_size, pooled, sampling, size):
    frac = (jnp.arange(sampling, dtype=jnp.float32) + 0.5) / sampling
    pos = jnp.arange(pooled, dtype=jnp.float32)
    coords = (start[:, None, None]
              + (pos[None, :, None] + frac[None, None, :]) * bin_size[:, None, None])
    valid = (coords >= -1.0) & (coords <= size)
    c = jnp.maximum(coords, 0.0)
    low = jnp.floor(c).astype(jnp.int32)
    at_edge = low >= size - 1
    low = jnp.where(at_edge, size - 1, low)
    high = jnp.where(at_edge, size - 1, low + 1)
    c = jnp.where(at_edge, low.astype(jnp.float32), c)
    l = c - low.astype(jnp.float32)
    hgt = 1.0 - l
    w = (hgt[..., None] * jax.nn.one_hot(low, size, dtype=jnp.float32)
         + l[..., None] * jax.nn.one_hot(high, size, dtype=jnp.float32))
    w = jnp.where(valid[..., None], w, 0.0)
    return w.mean(axis=2)


def roi_align_pallas(feat_bhwc, Wf, C, boxes, batch_idx, pooled, spatial_scale,
                     pc_pad, sampling_ratio=2):
    # feat_bhwc: (B, H, W*C) bf16.  Returns (R, pooled, pc_pad) bf16, lanes = [px*C+c | zeros].
    B, Hf, WC = feat_bhwc.shape
    R = boxes.shape[0]
    sx1 = boxes[:, 0] * spatial_scale
    sy1 = boxes[:, 1] * spatial_scale
    sx2 = boxes[:, 2] * spatial_scale
    sy2 = boxes[:, 3] * spatial_scale
    roi_w = jnp.maximum(sx2 - sx1, 1.0)
    roi_h = jnp.maximum(sy2 - sy1, 1.0)
    wy = _interp_matrix(sy1, roi_h / pooled, pooled, sampling_ratio, Hf).astype(jnp.bfloat16)
    wx = _interp_matrix(sx1, roi_w / pooled, pooled, sampling_ratio, Wf).astype(jnp.bfloat16)

    kern = functools.partial(_roi_align_kernel, P=pooled, W=Wf, C=C, PC_PAD=pc_pad)
    flops = int(2 * R * (pooled * Hf * WC + pooled * pooled * Wf * C))
    ce = pl.CostEstimate(
        flops=flops, transcendentals=0,
        bytes_accessed=int(R * (pooled * (Hf + Wf) * 2 + pooled * pc_pad * 2) + B * Hf * WC * 2))

    grid_spec = pltpu.PrefetchScalarGridSpec(
        num_scalar_prefetch=1,
        grid=(R,),
        in_specs=[
            pl.BlockSpec((1, pooled, Hf), lambda i, b: (i, 0, 0)),
            pl.BlockSpec((1, pooled, Wf), lambda i, b: (i, 0, 0)),
            pl.BlockSpec((1, Hf, WC), lambda i, b: (b[i], 0, 0)),   # batch select via prefetch
        ],
        out_specs=pl.BlockSpec((1, pooled, pc_pad), lambda i, b: (i, 0, 0)),
    )
    out = pl.pallas_call(
        kern,
        grid_spec=grid_spec,
        out_shape=jax.ShapeDtypeStruct((R, pooled, pc_pad), jnp.bfloat16),
        compiler_params=pltpu.CompilerParams(dimension_semantics=("parallel",)),
        cost_estimate=ce,
    )(jnp.asarray(batch_idx, jnp.int32), wy, wx, feat_bhwc)
    return out


# --------------------------------------------------------------------------
# On-device greedy batched NMS (fori_loop, fixed K output slots)
# --------------------------------------------------------------------------
def _device_nms(boxes, scores, labels, iou_thresh, score_thresh, topk):
    ws = boxes[:, 2] - boxes[:, 0]
    hs = boxes[:, 3] - boxes[:, 1]
    valid0 = (scores > score_thresh) & (ws >= 1e-2) & (hs >= 1e-2)   # remove_small_boxes
    s0 = jnp.where(valid0, scores, -1.0)

    max_coord = jnp.max(boxes)
    off = labels.astype(jnp.float32) * (max_coord + 1.0)
    ob = boxes + off[:, None]
    bx1, by1, bx2, by2 = ob[:, 0], ob[:, 1], ob[:, 2], ob[:, 3]
    areas = (bx2 - bx1) * (by2 - by1)

    def body(j, carry):
        s, keep, valid = carry
        i = jnp.argmax(s)
        ok = s[i] > 0.0
        keep = keep.at[j].set(i.astype(jnp.int32))
        valid = valid.at[j].set(ok)
        xx1 = jnp.maximum(bx1[i], bx1)
        yy1 = jnp.maximum(by1[i], by1)
        xx2 = jnp.minimum(bx2[i], bx2)
        yy2 = jnp.minimum(by2[i], by2)
        inter = jnp.maximum(xx2 - xx1, 0.0) * jnp.maximum(yy2 - yy1, 0.0)
        iou = inter / (areas[i] + areas - inter + 1e-12)
        s = jnp.where(iou > iou_thresh, -1.0, s)
        s = s.at[i].set(-1.0)
        return s, keep, valid

    keep0 = jnp.zeros((topk,), jnp.int32)
    valid_init = jnp.zeros((topk,), bool)
    _, keep, valid = jax.lax.fori_loop(0, topk, body, (s0, keep0, valid_init))
    count = jnp.sum(valid.astype(jnp.int32))
    return keep, valid, count


def _unpack_mask_slab(slab, R, M, ncp):
    # slab (R*M, M*4*ncp) laid out (r, y) x (x, ky, kx, cls) -> (R, ncp, 2M, 2M) NCHW
    a = slab.reshape(R, M, M, 2, 2, ncp)
    a = jnp.transpose(a, (0, 5, 1, 3, 2, 4))
    return a.reshape(R, ncp, 2 * M, 2 * M)


# --------------------------------------------------------------------------
# RoIHeads (eval-mode forward)
# --------------------------------------------------------------------------
class RoIHeadsPallas:
    def __init__(self, key, *, in_channels=16, representation_size=32,
                 num_classes=5, mask_channels=16, box_pool=7, mask_pool=14,
                 score_thresh=0.05, nms_thresh=0.5, detections_per_img=4,
                 bbox_reg_weights=(10.0, 10.0, 5.0, 5.0),
                 box_tile=128, mask_tile=8):
        self.num_classes = num_classes
        self.box_pool = box_pool
        self.mask_pool = mask_pool
        self.mask_channels = mask_channels
        self.in_channels = in_channels
        self.score_thresh = score_thresh
        self.nms_thresh = nms_thresh
        self.detections_per_img = detections_per_img
        self.bbox_reg_weights = bbox_reg_weights
        self.bbox_clip = math.log(1000.0 / 16.0)
        self.box_tile = box_tile          # use 256 on v6e/v7x, 128 on v5e
        self.mask_tile = mask_tile

        P, C, REP, nc = box_pool, in_channels, representation_size, num_classes
        M, mc = mask_pool, mask_channels
        self.box_group = _round_up(nc, 128)                       # lane-aligned output groups
        self.box_pc_pad = _round_up(P * C, 128)                   # roi_align lane pad (box)
        self.mask_pc_pad = _round_up(M * C, 128)                  # roi_align lane pad (mask)
        step = 128 // math.gcd(4 * M, 128)
        self.ncp = _round_up(nc, step)                            # mask-class lane pad

        ks = jax.random.split(key, 8)
        s = 0.02

        # --- box_head (TwoMLPHead): fold the NCHW-flatten perm + lane padding into fc6_w ---
        fc6_w_torch = np.asarray(jax.random.normal(ks[0], (C * P * P, REP), jnp.float32) * s)
        pyi, pxi, ci = np.meshgrid(np.arange(P), np.arange(P), np.arange(C), indexing="ij")
        perm = (ci * P * P + pyi * P + pxi).reshape(-1)           # pooled (py,px,c) -> torch (c,py,px)
        fc6_perm = fc6_w_torch[perm, :]
        fc6_full = np.zeros((P, self.box_pc_pad, REP), np.float32)
        fc6_full[:, :P * C, :] = fc6_perm.reshape(P, P * C, REP)
        self.fc6_w = jnp.asarray(fc6_full.reshape(P * self.box_pc_pad, REP), jnp.bfloat16)
        self.fc6_b = jnp.zeros((1, REP), jnp.float32)
        self.fc7_w = (jax.random.normal(ks[1], (REP, REP), jnp.float32) * s).astype(jnp.bfloat16)
        self.fc7_b = jnp.zeros((1, REP), jnp.float32)

        # --- box_predictor: cls + coordinate-major bbox, each group 128-lane aligned ---
        G = self.box_group
        cls_w = np.asarray(jax.random.normal(ks[2], (REP, nc), jnp.float32) * s)
        bbox_w = np.asarray(jax.random.normal(ks[3], (REP, nc * 4), jnp.float32) * s
                            ).reshape(REP, nc, 4)
        hw = np.zeros((REP, 5 * G), np.float32)
        hw[:, 0:nc] = cls_w
        for j in range(4):
            hw[:, (j + 1) * G:(j + 1) * G + nc] = bbox_w[:, :, j]
        self.head_w = jnp.asarray(hw, jnp.bfloat16)
        hb = np.zeros((1, 5 * G), np.float32)
        hb[0, nc:G] = -1e9                                        # padded logit cols -> softmax 0
        self.head_b = jnp.asarray(hb)

        # --- mask_head (two 3x3 conv+relu), tap-major (ky,kx,c) contraction layout ---
        self.mconv1_w = jnp.asarray(
            np.asarray(jax.random.normal(ks[4], (3, 3, C, mc), jnp.float32) * s
                       ).reshape(9 * C, mc), jnp.bfloat16)
        self.mconv1_b = jnp.zeros((1, mc), jnp.float32)
        self.mconv2_w = jnp.asarray(
            np.asarray(jax.random.normal(ks[5], (3, 3, mc, mc), jnp.float32) * s
                       ).reshape(9 * mc, mc), jnp.bfloat16)
        self.mconv2_b = jnp.zeros((1, mc), jnp.float32)

        # --- mask_predictor (2x2 stride-2 deconv + relu, then 1x1 conv, lane-padded classes) ---
        self.mdeconv_w = jnp.asarray(
            np.asarray(jax.random.normal(ks[6], (mc, 2, 2, mc), jnp.float32) * s
                       ).reshape(mc, 4 * mc), jnp.bfloat16)
        self.mdeconv_b = jnp.zeros((1, 4 * mc), jnp.float32)
        wlg = np.zeros((mc, self.ncp), np.float32)
        wlg[:, :nc] = np.asarray(jax.random.normal(ks[7], (mc, nc), jnp.float32) * s)
        self.mlogit_w = jnp.asarray(wlg, jnp.bfloat16)
        self.mlogit_b = jnp.zeros((1, self.ncp), jnp.float32)

    # ---- fused box head: grid over 128/256-row ROI tiles, weights VMEM-resident ----
    def _fused_box_head(self, pooled_bf16, prop, img_wh):
        G = self.box_group
        N_pad, P, PCp = pooled_bf16.shape
        REP = self.fc7_w.shape[0]
        F2 = P * PCp
        OUTW = 5 * G
        TILE = self.box_tile

        kern = functools.partial(
            _box_head_kernel, G=G,
            weights=tuple(float(v) for v in self.bbox_reg_weights),
            clip=float(self.bbox_clip))
        ce = pl.CostEstimate(
            flops=int(2 * N_pad * (F2 * REP + REP * REP + REP * OUTW)),
            transcendentals=int(N_pad * 3 * G),
            bytes_accessed=int(N_pad * (F2 * 2 + OUTW * 4 + 24)
                               + 2 * (F2 * REP + REP * REP + REP * OUTW)))
        slab = pl.pallas_call(
            kern,
            out_shape=jax.ShapeDtypeStruct((N_pad, OUTW), jnp.float32),
            grid=(N_pad // TILE,),
            in_specs=[
                pl.BlockSpec((TILE, P, PCp), lambda i: (i, 0, 0)),   # pooled feats (fc6-ready)
                pl.BlockSpec((F2, REP), lambda i: (0, 0)),           # fc6_w
                pl.BlockSpec((1, REP), lambda i: (0, 0)),            # fc6_b
                pl.BlockSpec((REP, REP), lambda i: (0, 0)),          # fc7_w
                pl.BlockSpec((1, REP), lambda i: (0, 0)),            # fc7_b
                pl.BlockSpec((REP, OUTW), lambda i: (0, 0)),         # head_w (cls|bbox)
                pl.BlockSpec((1, OUTW), lambda i: (0, 0)),           # head_b
                pl.BlockSpec((TILE, 4), lambda i: (i, 0)),           # proposals
                pl.BlockSpec((TILE, 2), lambda i: (i, 0)),           # image (w, h)
            ],
            out_specs=pl.BlockSpec((TILE, OUTW), lambda i: (i, 0)),
            compiler_params=pltpu.CompilerParams(
                dimension_semantics=("parallel",),
                vmem_limit_bytes=32 * 1024 * 1024),
            cost_estimate=ce,
        )(pooled_bf16, self.fc6_w, self.fc6_b, self.fc7_w, self.fc7_b,
          self.head_w, self.head_b, prop.astype(jnp.float32), img_wh.astype(jnp.float32))
        return slab

    # ---- fused mask head, gridded over ROI tiles ----
    def _fused_mask_head(self, mfeat_bf16):
        Rtot = mfeat_bf16.shape[0]
        Rb = self.mask_tile
        M = self.mask_pool
        C = self.in_channels
        mc = self.mask_channels
        ncp = self.ncp
        OUTW = M * 4 * ncp
        kern = functools.partial(_mask_head_kernel, Rb=Rb, M=M, C=C,
                                 C1=mc, C2=mc, C3=mc, NCp=ncp)
        flops_per_roi = (2 * (M + 2) ** 2 * 9 * C * mc + 2 * M * M * 9 * mc * mc
                         + 2 * M * M * mc * 4 * mc + 2 * M * M * 4 * mc * ncp)
        ce = pl.CostEstimate(
            flops=int(Rtot * flops_per_roi),
            transcendentals=int(Rtot * M * M * 4 * ncp),
            bytes_accessed=int(Rtot * (M * self.mask_pc_pad * 2 + 2 * M * OUTW * 4)
                               + 2 * (9 * C * mc + 9 * mc * mc + mc * 4 * mc + mc * ncp)))
        out_sds = jax.ShapeDtypeStruct((Rtot * M, OUTW), jnp.float32)
        logits, probs = pl.pallas_call(
            kern,
            out_shape=(out_sds, out_sds),
            grid=(Rtot // Rb,),
            in_specs=[
                pl.BlockSpec((Rb, M, self.mask_pc_pad), lambda i: (i, 0, 0)),
                pl.BlockSpec(self.mconv1_w.shape, lambda i: (0, 0)),
                pl.BlockSpec(self.mconv1_b.shape, lambda i: (0, 0)),
                pl.BlockSpec(self.mconv2_w.shape, lambda i: (0, 0)),
                pl.BlockSpec(self.mconv2_b.shape, lambda i: (0, 0)),
                pl.BlockSpec(self.mdeconv_w.shape, lambda i: (0, 0)),
                pl.BlockSpec(self.mdeconv_b.shape, lambda i: (0, 0)),
                pl.BlockSpec(self.mlogit_w.shape, lambda i: (0, 0)),
                pl.BlockSpec(self.mlogit_b.shape, lambda i: (0, 0)),
            ],
            out_specs=(pl.BlockSpec((Rb * M, OUTW), lambda i: (i, 0)),
                       pl.BlockSpec((Rb * M, OUTW), lambda i: (i, 0))),
            compiler_params=pltpu.CompilerParams(
                dimension_semantics=("parallel",),
                vmem_limit_bytes=32 * 1024 * 1024),
            cost_estimate=ce,
        )(mfeat_bf16, self.mconv1_w, self.mconv1_b, self.mconv2_w, self.mconv2_b,
          self.mdeconv_w, self.mdeconv_b, self.mlogit_w, self.mlogit_b)
        return logits, probs

    def __call__(self, features_nchw, proposals, image_shapes, spatial_scale):
        nc = self.num_classes
        B, C, Hf, Wf = features_nchw.shape
        feat = jnp.transpose(features_nchw, (0, 2, 3, 1)).reshape(B, Hf, Wf * C)
        feat = feat.astype(jnp.bfloat16)

        boxes_per_image = [int(p.shape[0]) for p in proposals]
        N = sum(boxes_per_image)
        TILE = self.box_tile
        N_pad = _round_up(max(N, 1), TILE)
        prop_cat = jnp.concatenate([p.astype(jnp.float32) for p in proposals], axis=0)
        prop_pad = jnp.pad(prop_cat, ((0, N_pad - N), (0, 0)))
        batch_idx = np.concatenate(
            [np.full((n,), i, np.int32) for i, n in enumerate(boxes_per_image)]
            + [np.zeros((N_pad - N,), np.int32)])

        # ---- box branch: per-ROI roi_align -> fused (head + predictor + decode + softmax) ----
        pooled = roi_align_pallas(feat, Wf, C, prop_pad, batch_idx, self.box_pool,
                                  spatial_scale, self.box_pc_pad)      # (N_pad, P, PCpad)

        img_wh = np.concatenate(
            [np.broadcast_to(np.array([[float(s_[1]), float(s_[0])]], np.float32), (n, 2))
             for s_, n in zip(image_shapes, boxes_per_image)], axis=0)
        img_wh = jnp.asarray(np.pad(img_wh, ((0, N_pad - N), (0, 0))))

        slab = self._fused_box_head(pooled, prop_pad, img_wh)[:N]      # (N, 5*G) f32
        G = self.box_group
        pred_boxes = jnp.stack([slab[:, 0 * G:0 * G + nc], slab[:, 1 * G:1 * G + nc],
                                slab[:, 2 * G:2 * G + nc], slab[:, 3 * G:3 * G + nc]], axis=-1)
        pred_scores = slab[:, 4 * G:4 * G + nc]

        # ---- postprocess_detections: device greedy batched NMS (fori_loop), K slots/image ----
        K = self.detections_per_img
        cls_ids = jnp.arange(1, nc, dtype=jnp.int32)
        det_boxes, det_scores, det_labels, det_counts = [], [], [], []
        start = 0
        for n in boxes_per_image:
            b = pred_boxes[start:start + n, 1:, :].reshape(-1, 4)      # drop background
            s_ = pred_scores[start:start + n, 1:].reshape(-1)
            l = jnp.broadcast_to(cls_ids[None, :], (n, nc - 1)).reshape(-1)
            keep, valid, cnt = _device_nms(b, s_, l, self.nms_thresh, self.score_thresh, K)
            det_boxes.append(jnp.where(valid[:, None], b[keep], 0.0))
            det_scores.append(jnp.where(valid, s_[keep], 0.0))
            det_labels.append(jnp.where(valid, l[keep], 0))
            det_counts.append(cnt)
            start += n
        det_boxes = jnp.concatenate(det_boxes, axis=0)                 # (B*K, 4)
        det_scores = jnp.concatenate(det_scores, axis=0)
        det_labels = jnp.concatenate(det_labels, axis=0)
        counts = jnp.stack(det_counts)

        # ---- mask branch (eval) on the fixed-size padded detection set ----
        mpool = self.mask_pool
        Rm = B * K
        Rm_pad = _round_up(Rm, self.mask_tile)
        det_boxes_pad = jnp.pad(det_boxes, ((0, Rm_pad - Rm), (0, 0)))
        m_bidx = np.concatenate([np.repeat(np.arange(B, dtype=np.int32), K),
                                 np.zeros((Rm_pad - Rm,), np.int32)])
        mfeat = roi_align_pallas(feat, Wf, C, det_boxes_pad, m_bidx, mpool,
                                 spatial_scale, self.mask_pc_pad)      # (Rm_pad, M, MCpad)
        logits_slab, probs_slab = self._fused_mask_head(mfeat)
        mask_logits_full = _unpack_mask_slab(logits_slab, Rm_pad, mpool, self.ncp)[:Rm, :nc]
        mask_probs_full = _unpack_mask_slab(probs_slab, Rm_pad, mpool, self.ncp)[:Rm, :nc]
        sel_probs = mask_probs_full[jnp.arange(Rm), det_labels][:, None]   # maskrcnn_inference

        # ---- host finalization (single tiny count read, then static slicing) ----
        counts_np = np.asarray(jax.device_get(counts))
        result, mask_proposals, labels_out, kept_logits = [], [], [], []
        for i in range(B):
            cnt = int(counts_np[i])
            lo, hi = i * K, i * K + cnt
            r = {"boxes": det_boxes[lo:hi],
                 "scores": det_scores[lo:hi],
                 "labels": det_labels[lo:hi],
                 "masks": sel_probs[lo:hi]}
            result.append(r)
            mask_proposals.append(r["boxes"])
            labels_out.append(r["labels"])
            kept_logits.append(mask_logits_full[lo:hi])
        total_det = int(counts_np.sum())
        if total_det > 0:
            mask_logits = jnp.concatenate(kept_logits, axis=0)
        else:
            mask_logits = jnp.zeros((0, nc, 2 * mpool, 2 * mpool), jnp.float32)
        losses = {}
        return result, losses, mask_proposals, labels_out, mask_logits


# --------------------------------------------------------------------------
if __name__ == "__main__":
    key = jax.random.PRNGKey(0)
    kp, kf, kb1, kb2 = jax.random.split(key, 4)

    B, C, Hf, Wf = 2, 16, 16, 16
    padded_hw = 128                                     # padded batch image size
    image_shapes = [(128, 128), (120, 124)]             # (H, W) per image
    spatial_scale = Hf / padded_hw                      # single-level feature map

    features = jax.random.normal(kf, (B, C, Hf, Wf), dtype=jnp.float32)

    num_props = 8
    ctr = jax.random.uniform(kb1, (B, num_props, 2), minval=20.0, maxval=100.0)
    size = jax.random.uniform(kb2, (B, num_props, 2), minval=16.0, maxval=60.0)
    x1y1 = jnp.clip(ctr - size / 2.0, 0.0, 127.0)
    x2y2 = jnp.clip(ctr + size / 2.0, 1.0, 128.0)
    props = jnp.concatenate([x1y1, x2y2], axis=-1)
    proposals = [props[i] for i in range(B)]

    heads = RoIHeadsPallas(kp, in_channels=C, representation_size=32, num_classes=5,
                           mask_channels=16, box_pool=7, mask_pool=14,
                           score_thresh=0.05, nms_thresh=0.5, detections_per_img=4,
                           box_tile=128, mask_tile=8)

    result, losses, mask_proposals, labels, mask_logits = heads(
        features, proposals, image_shapes, spatial_scale)

    jax.block_until_ready(mask_logits)
    for r in result:
        jax.block_until_ready(r["boxes"])
        jax.block_until_ready(r["scores"])
        jax.block_until_ready(r["labels"])
        jax.block_until_ready(r["masks"])

    print("KERNEL_OK")
</pallas_src>

<mosaic_0001>
module attributes {stable_mosaic.version = 11 : i64} {
  func.func @_roi_align_kernel(%arg0: i32, %arg1: memref<128xi32, #tpu.memory_space<smem>>, %arg2: memref<1x7x16xbf16, #tpu.memory_space<vmem>>, %arg3: memref<1x7x16xbf16, #tpu.memory_space<vmem>>, %arg4: memref<1x16x256xbf16, #tpu.memory_space<vmem>>, %arg5: memref<1x7x128xbf16, #tpu.memory_space<vmem>>) attributes {dimension_semantics = [#tpu.dimension_semantics<parallel>], iteration_bounds = array<i64: 128>, scalar_prefetch = 1 : i64, scratch_operands = 0 : i64, tpu.core_type = #tpu.core_type<tc>, window_params = [{transform_indices = @transform_0, window_bounds = array<i64: 1, 7, 16>}, {transform_indices = @transform_1, window_bounds = array<i64: 1, 7, 16>}, {transform_indices = @transform_2, window_bounds = array<i64: 1, 16, 256>}, {transform_indices = @transform_3, window_bounds = array<i64: 1, 7, 128>}]} {
    %c0 = arith.constant 0 : index
    %c0_0 = arith.constant 0 : index
    %c0_1 = arith.constant 0 : index
    %0 = vector.load %arg2[%c0, %c0_0, %c0_1] : memref<1x7x16xbf16, #tpu.memory_space<vmem>>, vector<1x7x16xbf16>
    %1 = vector.shape_cast %0 : vector<1x7x16xbf16> to vector<7x16xbf16>
    %c0_2 = arith.constant 0 : index
    %c0_3 = arith.constant 0 : index
    %c0_4 = arith.constant 0 : index
    %2 = vector.load %arg4[%c0_2, %c0_3, %c0_4] : memref<1x16x256xbf16, #tpu.memory_space<vmem>>, vector<1x16x256xbf16>
    %3 = vector.shape_cast %2 : vector<1x16x256xbf16> to vector<16x256xbf16>
    %cst = arith.constant dense<0.000000e+00> : vector<7x256xf32>
    %4 = tpu.matmul %1, %3, %cst {dimension_numbers = #tpu.dot_dimension_numbers<[1], [0], [0], [1], [0, 0, 1, 1], [], []>} : vector<7x16xbf16>, vector<16x256xbf16>, vector<7x256xf32> -> vector<7x256xf32>
    %5 = vector.shape_cast %4 : vector<7x256xf32> to vector<7x16x16xf32>
    %6 = arith.truncf %5 : vector<7x16x16xf32> to vector<7x16x16xbf16>
    %c0_5 = arith.constant 0 : index
    %c0_6 = arith.constant 0 : index
    %c0_7 = arith.constant 0 : index
    %7 = vector.load %arg3[%c0_5, %c0_6, %c0_7] : memref<1x7x16xbf16, #tpu.memory_space<vmem>>, vector<1x7x16xbf16>
    %8 = vector.shape_cast %7 : vector<1x7x16xbf16> to vector<7x16xbf16>
    %9 = vector.shape_cast %8 : vector<7x16xbf16> to vector<1x7x16xbf16>
    %10 = vector.shape_cast %9 : vector<1x7x16xbf16> to vector<1x7x16xbf16>
    %11 = vector.broadcast %10 : vector<1x7x16xbf16> to vector<7x7x16xbf16>
    "tpu.trace_start"() <{level = 10 : i32, message = "ypw,ywc->ypc"}> : () -> ()
    %cst_8 = arith.constant dense<0.000000e+00> : vector<7x7x16xf32>
    %12 = tpu.matmul %11, %6, %cst_8 {dimension_numbers = #tpu.dot_dimension_numbers<[2], [1], [1], [2], [0, 0, 0, 1, 1, 2], [0], [0]>} : vector<7x7x16xbf16>, vector<7x16x16xbf16>, vector<7x7x16xf32> -> vector<7x7x16xf32>
    "tpu.trace_stop"() : () -> ()
    %13 = vector.shape_cast %12 : vector<7x7x16xf32> to vector<7x112xf32>
    %cst_9 = arith.constant 0.000000e+00 : f32
    %14 = vector.broadcast %cst_9 : f32 to vector<7x16xf32>
    %15 = tpu.concatenate %13, %14 in 1 : vector<7x112xf32>, vector<7x16xf32> -> vector<7x128xf32>
    %16 = arith.truncf %15 : vector<7x128xf32> to vector<7x128xbf16>
    %c0_10 = arith.constant 0 : index
    %c0_11 = arith.constant 0 : index
    %c0_12 = arith.constant 0 : index
    %17 = vector.load %arg5[%c0_10, %c0_11, %c0_12] : memref<1x7x128xbf16, #tpu.memory_space<vmem>>, vector<1x7x128xbf16>
    %18 = vector.shape_cast %17 : vector<1x7x128xbf16> to vector<7x128xbf16>
    %19 = vector.shape_cast %16 : vector<7x128xbf16> to vector<1x7x128xbf16>
    tpu.vector_store %arg5[%c0_10, %c0_11, %c0_12], %19 {strides = array<i32>} : memref<1x7x128xbf16, #tpu.memory_space<vmem>>, vector<1x7x128xbf16>,
    return
  }
  func.func @transform_0(%arg0: i32, %arg1: memref<128xi32, #tpu.memory_space<smem>>) -> (i32, i32, i32) {
    %c0_i32 = arith.constant 0 : i32
    %c0_i32_0 = arith.constant 0 : i32
    %c0_i32_1 = arith.constant 0 : i32
    return %arg0, %c0_i32, %c0_i32_0 : i32, i32, i32
  }
  func.func @transform_1(%arg0: i32, %arg1: memref<128xi32, #tpu.memory_space<smem>>) -> (i32, i32, i32) {
    %c0_i32 = arith.constant 0 : i32
    %c0_i32_0 = arith.constant 0 : i32
    %c0_i32_1 = arith.constant 0 : i32
    return %arg0, %c0_i32, %c0_i32_0 : i32, i32, i32
  }
  func.func @transform_2(%arg0: i32, %arg1: memref<128xi32, #tpu.memory_space<smem>>) -> (i32, i32, i32) {
    %0 = arith.index_cast %arg0 : i32 to index
    %1 = memref.load %arg1[%0] : memref<128xi32, #tpu.memory_space<smem>>
    %c0_i32 = arith.constant 0 : i32
    %c0_i32_0 = arith.constant 0 : i32
    %c0_i32_1 = arith.constant 0 : i32
    return %1, %c0_i32, %c0_i32_0 : i32, i32, i32
  }
  func.func @transform_3(%arg0: i32, %arg1: memref<128xi32, #tpu.memory_space<smem>>) -> (i32, i32, i32) {
    %c0_i32 = arith.constant 0 : i32
    %c0_i32_0 = arith.constant 0 : i32
    %c0_i32_1 = arith.constant 0 : i32
    return %arg0, %c0_i32, %c0_i32_0 : i32, i32, i32
  }
}

</mosaic_0001>

<llo_original>
// kernel: tpu_custom_call.1
$region0: #{tpu_custom_call.1}
  #allocation0 [shape = 'u32[]', space=smem, size = 0x4, offset = 0x4, fixed_abs, tag = 'smem constant byte address 0x4 - core index']
  #allocation1 [shape = 'u32[144,128]{1,0:T(1,128)}', space=vmem, size = 0x12000, scoped, tag = 'internal scratch']
  #allocation2 [shape = 's32[1]{0}', space=sflag, size = 0x4, scoped, tag = 'scoped memory for tpu_custom_call.1']
  #allocation3 [shape = 'u8[512]{0}', space=smem, size = 0x200, scoped, tag = 'prefetched SMEM operand 0']
  %s0 = inlined_call_operand.vmem [shape: s32[128], index: 0, kind: input, shape index: {}]
  %s1 = inlined_call_operand.vmem [shape: bf16[128,7,16], index: 1, kind: input, shape index: {}]
  %s2 = inlined_call_operand.vmem [shape: bf16[128,7,16], index: 2, kind: input, shape index: {}]
  %s3 = inlined_call_operand.vmem [shape: bf16[2,16,256], index: 3, kind: input, shape index: {}]
  %s4 = inlined_call_operand.vmem [shape: bf16[128,7,128], index: 4, kind: output, shape index: {}]
  %s5 = sld [smem:[#allocation0]]
  $region45: #{tpu_custom_call.1} parent=0
    _
  %s7 = ssub.s32 1, %s5
  %s8 = scalar_select 0, %s7, %s5
  %s9 = sshll.u32 %s0, 4
  %s10 = int_to_ptr.vmem [resolvable:$true] %s9
  %12 = dma.vmem_to_smem %s10, 16, [#allocation3], [#allocation2]
  %13 = dma.done [#allocation2], 16
  %14 = sfence
  loop: start=0, step=1, limit=130
  $region2: #{tpu_custom_call.1} parent=0 // loop_pre_header
    _
  $region3: #{tpu_custom_call.1} parent=0 // loop_header
    %s16 = sphi 0, %s20
    %p17 = scmp.ge.s32.totalorder %s16, 130
    %s26 = sphi 0, %s28
    %s29 = sphi 0, %s26
    %s30 = sphi 0, %s29
    %s46 = sphi 0, %s30
    %s52 = sphi 0, %s54
    %s55 = sphi 0, %s52
    %s56 = sphi 0, %s55
    %s72 = sphi 0, %s56
    %s80 = sphi 0, %s82
    %s83 = sphi 0, %s80
    %s84 = sphi 0, %s83
    %s100 = sphi 0, %s84
    %s106 = sphi 0, %s108
    %s109 = sphi 0, %s106
    %s110 = sphi 0, %s109
    %s126 = sphi 0, %s110
  $region4: #{tpu_custom_call.1} parent=0 // loop_header_branch
    %19 = sbr.rel (%p17) target = $region8
  $region5: #{tpu_custom_call.1} parent=0 // loop_body
    %s21 = ssub.s32 %s16, 1
    %s22 = ssub.s32 %s16, 2
    %s23 = sadd.s32 %s16, 1
    %s24 = ssub.s32 %s16, %s23
    %p25 = scmp.eq.s32.totalorder %s24, 0
    %s27 = sadd.s32 %s26, 1
    %s28 = scalar_select %p25, %s26, %s27
    %p31 = pneg %p25
    %p32 = scmp.eq.s32.totalorder %s16, 127
    %p33 = por %p31, %p32
    %p34 = scmp.ne.s32.totalorder %s26, %s29
    %p35 = scmp.eq.s32.totalorder %s16, 0
    %p36 = por %p34, %p35
    %p37 = scmp.ne.s32.totalorder %s26, %s29
    %p38 = scmp.eq.s32.totalorder %s21, 127
    %p39 = por %p37, %p38
    %p40 = scmp.ne.s32.totalorder %s29, %s30
    %p41 = scmp.eq.s32.totalorder %s21, 0
    %p42 = por %p40, %p41
    %p43 = scmp.ne.s32.totalorder %s29, %s30
    %p44 = scmp.eq.s32.totalorder %s22, 127
    %p45 = por %p43, %p44
    %p47 = scmp.ne.s32.totalorder %s30, %s46
    %p48 = scmp.eq.s32.totalorder %s22, 0
    %p49 = por %p47, %p48
    %s50 = ssub.s32 %s16, %s23
    %p51 = scmp.eq.s32.totalorder %s50, 0
    %s53 = sadd.s32 %s52, 1
    %s54 = scalar_select %p51, %s52, %s53
    %p57 = pneg %p51
    %p58 = scmp.eq.s32.totalorder %s16, 127
    %p59 = por %p57, %p58
    %p60 = scmp.ne.s32.totalorder %s52, %s55
    %p61 = scmp.eq.s32.totalorder %s16, 0
    %p62 = por %p60, %p61
    %p63 = scmp.ne.s32.totalorder %s52, %s55
    %p64 = scmp.eq.s32.totalorder %s21, 127
    %p65 = por %p63, %p64
    %p66 = scmp.ne.s32.totalorder %s55, %s56
    %p67 = scmp.eq.s32.totalorder %s21, 0
    %p68 = por %p66, %p67
    %p69 = scmp.ne.s32.totalorder %s55, %s56
    %p70 = scmp.eq.s32.totalorder %s22, 127
    %p71 = por %p69, %p70
    %p73 = scmp.ne.s32.totalorder %s56, %s72
    %p74 = scmp.eq.s32.totalorder %s22, 0
    %p75 = por %p73, %p74
    %s76 = sld [smem:[#allocation3 + %s16]]
    %s77 = sld [smem:[#allocation3 + %s23]]
    %s78 = ssub.s32 %s76, %s77
    %p79 = scmp.eq.s32.totalorder %s78, 0
    %s81 = sadd.s32 %s80, 1
    %s82 = scalar_select %p79, %s80, %s81
    %p85 = pneg %p79
    %p86 = scmp.eq.s32.totalorder %s16, 127
    %p87 = por %p85, %p86
    %p88 = scmp.ne.s32.totalorder %s80, %s83
    %p89 = scmp.eq.s32.totalorder %s16, 0
    %p90 = por %p88, %p89
    %p91 = scmp.ne.s32.totalorder %s80, %s83
    %p92 = scmp.eq.s32.totalorder %s21, 127
    %p93 = por %p91, %p92
    %p94 = scmp.ne.s32.totalorder %s83, %s84
    %p95 = scmp.eq.s32.totalorder %s21, 0
    %p96 = por %p94, %p95
    %p97 = scmp.ne.s32.totalorder %s83, %s84
    %p98 = scmp.eq.s32.totalorder %s22, 127
    %p99 = por %p97, %p98
    %p101 = scmp.ne.s32.totalorder %s84, %s100
    %p102 = scmp.eq.s32.totalorder %s22, 0
    %p103 = por %p101, %p102
    %s104 = ssub.s32 %s16, %s23
    %p105 = scmp.eq.s32.totalorder %s104, 0
    %s107 = sadd.s32 %s106, 1
    %s108 = scalar_select %p105, %s106, %s107
    %p111 = pneg %p105
    %p112 = scmp.eq.s32.totalorder %s16, 127
    %p113 = por %p111, %p112
    %p114 = scmp.ne.s32.totalorder %s106, %s109
    %p115 = scmp.eq.s32.totalorder %s16, 0
    %p116 = por %p114, %p115
    %p117 = scmp.ne.s32.totalorder %s106, %s109
    %p118 = scmp.eq.s32.totalorder %s21, 127
    %p119 = por %p117, %p118
    %p120 = scmp.ne.s32.totalorder %s109, %s110
    %p121 = scmp.eq.s32.totalorder %s21, 0
    %p122 = por %p120, %p121
    %p123 = scmp.ne.s32.totalorder %s109, %s110
    %p124 = scmp.eq.s32.totalorder %s22, 127
    %p125 = por %p123, %p124
    %p127 = scmp.ne.s32.totalorder %s110, %s126
    %p128 = scmp.eq.s32.totalorder %s22, 0
    %p129 = por %p127, %p128
    %p130 = scmp.le.s32.totalorder 1, %s16
    %p131 = scmp.lt.s32.totalorder %s16, 129
    %p132 = pnand %p130, %p131
    %p133 = pneg %p132
    // Predicated region
    $region9: #{tpu_custom_call.1} parent=5 // pred_check
      _
    $region10: #{tpu_custom_call.1} parent=5 // pred_check_branch
      %135 = sbr.rel (%p132) target = $region12
    $region11: #{tpu_custom_call.1} parent=5 // pred_region
      %s136 = ssub.s32 %s16, 1
    $region12: #{tpu_custom_call.1} parent=5 // pred_fallthru
      _
    %p137 = scmp.lt.s32.totalorder %s16, 128
    // Predicated region
    $region13: #{tpu_custom_call.1} parent=5 // pred_check
      %p138 = pneg %p137
    $region14: #{tpu_custom_call.1} parent=5 // pred_check_branch
      %140 = sbr.rel (%p138) target = $region16
    $region15: #{tpu_custom_call.1} parent=5 // pred_region
      // Predicated region
      $region17: #{tpu_custom_call.1} parent=15 // pred_check
        %p141 = pneg %p36
      $region18: #{tpu_custom_call.1} parent=15 // pred_check_branch
        %143 = sbr.rel (%p141) target = $region20
      $region19: #{tpu_custom_call.1} parent=15 // pred_region
        %p144 = scmp.lt.s32.totalorder %s16, 127
        %s145 = scalar_select %p144, %s16, 127
        %s146 = smul.addr %s145, 4
        %s147 = scalar_lea.vmem %s1, %s146
      $region20: #{tpu_custom_call.1} parent=15 // pred_fallthru
        _
      // Predicated region
      $region21: #{tpu_custom_call.1} parent=15 // pred_check
        %p148 = pneg %p62
      $region22: #{tpu_custom_call.1} parent=15 // pred_check_branch
        %150 = sbr.rel (%p148) target = $region24
      $region23: #{tpu_custom_call.1} parent=15 // pred_region
        %p151 = scmp.lt.s32.totalorder %s16, 127
        %s152 = scalar_select %p151, %s16, 127
        %s153 = smul.addr %s152, 4
        %s154 = scalar_lea.vmem %s2, %s153
      $region24: #{tpu_custom_call.1} parent=15 // pred_fallthru
        _
      // Predicated region
      $region25: #{tpu_custom_call.1} parent=15 // pred_check
        %p155 = pneg %p90
      $region26: #{tpu_custom_call.1} parent=15 // pred_check_branch
        %157 = sbr.rel (%p155) target = $region28
      $region27: #{tpu_custom_call.1} parent=15 // pred_region
        %s158 = sld [smem:[#allocation3 + %s16]]
        %p159 = scmp.lt.s32.totalorder %s158, 1
        %s160 = scalar_select %p159, %s158, 1
        %s161 = smul.addr %s160, 4
        %s162 = smul.addr %s161, 4
        %s163 = scalar_lea.vmem %s3, %s162
        %s164 = sld [smem:[#allocation3 + %s16]]
      $region28: #{tpu_custom_call.1} parent=15 // pred_fallthru
        _
    $region16: #{tpu_custom_call.1} parent=5 // pred_fallthru
      _
    %p165 = scmp.le.s32.totalorder 1, %s16
    %p166 = scmp.lt.s32.totalorder %s16, 129
    %p167 = pnand %p165, %p166
    %p168 = pneg %p167
    // Predicated region
    $region29: #{tpu_custom_call.1} parent=5 // pred_check
      _
    $region30: #{tpu_custom_call.1} parent=5 // pred_check_branch
      %170 = sbr.rel (%p167) target = $region32
    $region31: #{tpu_custom_call.1} parent=5 // pred_region
      %s171 = ssub.s32 %s16, 1
      %p172 = scmp.lt.s32.totalorder %s21, 127
      %s173 = scalar_select %p172, %s21, 127
      %s174 = smul.addr %s173, 4
      %s175 = scalar_lea.vmem %s1, %s174
      %p176 = pneg %p42
      %p177 = pneg %p39
      %p178 = scmp.lt.s32.totalorder %s21, 127
      %s179 = scalar_select %p178, %s21, 127
      %s180 = smul.addr %s179, 4
      %s181 = scalar_lea.vmem %s2, %s180
      %p182 = pneg %p68
      %p183 = pneg %p65
      %s184 = sld [smem:[#allocation3 + %s21]]
      %p185 = scmp.lt.s32.totalorder %s184, 1
      %s186 = scalar_select %p185, %s184, 1
      %s187 = smul.addr %s186, 4
      %s188 = smul.addr %s187, 4
      %s189 = scalar_lea.vmem %s3, %s188
      %p190 = pneg %p96
      %p191 = pneg %p93
      %p192 = pneg %p122
      %p193 = pneg %p119
      %p194 = scmp.lt.s32.totalorder %s21, 127
      %s195 = scalar_select %p194, %s21, 127
      %s196 = smul.addr %s195, 4
      %s197 = scalar_lea.vmem %s4, %s196
      %p198 = scmp.lt.s32.totalorder %s21, 127
      %s199 = scalar_select %p198, %s21, 127
      %s200 = smul.addr %s199, 4
      %s201 = scalar_lea.vmem %s1, %s200
      %p202 = scmp.lt.s32.totalorder %s21, 127
      %s203 = scalar_select %p202, %s21, 127
      %s204 = smul.addr %s203, 4
      %s205 = scalar_lea.vmem %s2, %s204
      %s206 = sld [smem:[#allocation3 + %s21]]
      %p207 = scmp.lt.s32.totalorder %s206, 1
      %s208 = scalar_select %p207, %s206, 1
      %s209 = smul.addr %s208, 4
      %s210 = smul.addr %s209, 4
      %s211 = scalar_lea.vmem %s3, %s210
      %s212 = sld [smem:[#allocation3 + %s21]]
      %p213 = scmp.lt.s32.totalorder %s21, 127
      %s214 = scalar_select %p213, %s21, 127
      %s215 = smul.addr %s214, 4
      %s216 = scalar_lea.vmem %s4, %s215
      %v218 = vld [vmem:[%s201] sm:$0xf]
      %v219 = vld [vmem:[%s211] sm:$0xff]
      %v220 = vld [vmem:[%s211 + $0x8] sm:$0xff]
      %v223 = vunpack.c.l.b16 %v219
      %v224 = vunpack.c.h.b16 %v219
      %v225 = vunpack.c.l.b16 %v220
      %v226 = vunpack.c.h.b16 %v220
      %v227 = vpack.c.b16 %v225, %v223
      %v228 = vpack.c.b16 %v226, %v224
      %vm231 = vcmask 130048
      %v233 = vsel %vm231, %v218, 0
      %235 = vmatprep.subr.bf16.mxu0 %v228
      %236 = vmatpush1.bf16.msra.mxu0 %v227
      %237 = vmatprep.subr.bf16.mxu0 0
      %238 = vmatpush1.bf16.msra.mxu0 0
      %239 = vmatprep.subr.bf16.mxu0 0
      %240 = vmatpush1.bf16.msra.mxu0 0
      %241 = vmatprep.subr.bf16.mxu0 0
      %242 = vmatpush1.bf16.msra.mxu0 0
      %243 = vmatprep.subr.bf16.mxu0 0
      %244 = vmatpush1.bf16.msra.mxu0 0
      %245 = vmatprep.subr.bf16.mxu0 0
      %246 = vmatpush1.bf16.msra.mxu0 0
      %247 = vmatprep.subr.bf16.mxu0 0
      %248 = vmatpush1.bf16.msra.mxu0 0
      %249 = vmatprep.subr.bf16.mxu0 0
      %250 = vmatpush1.bf16.msra.mxu0 0
      %251 = vmatprep.subr.bf16.mxu0 0
      %252 = vmatpush1.bf16.msra.mxu0 0
      %253 = vmatprep.subr.bf16.mxu0 0
      %254 = vmatpush1.bf16.msra.mxu0 0
      %255 = vmatprep.subr.bf16.mxu0 0
      %256 = vmatpush1.bf16.msra.mxu0 0
      %257 = vmatprep.subr.bf16.mxu0 0
      %258 = vmatpush1.bf16.msra.mxu0 0
      %259 = vmatprep.subr.bf16.mxu0 0
      %260 = vmatpush1.bf16.msra.mxu0 0
      %261 = vmatprep.subr.bf16.mxu0 0
      %262 = vmatpush1.bf16.msra.mxu0 0
      %263 = vmatprep.subr.bf16.mxu0 0
      %264 = vmatpush1.bf16.msra.mxu0 0
      %265 = vmatprep.subr.bf16.mxu0 0
      %266 = vmatpush1.bf16.msra.mxu0 0
      %267 = vmatprep.mubr.bf16.mxu0 0
      %268 = vmatmul.mubr.bf16.gmra.mrb[0].mxu0 %v233
      %v269 = vpop.f32.mrb[0].mxu0
      %v270 = vadd.f32 0.0, %v269
      %v271 = vpop.f32.mrb[0].mxu0
      %v272 = vadd.f32 0.0, %v271
      %v273 = vpop.f32.mrb[0].mxu0
      %v274 = vpop.f32.mrb[0].mxu0
      %275 = vdwg.mxu0
      %277 = vrot.lane.b32.xlu0 %v270, 112
      %v278 = vpop.permute.xlu0 %277
      %280 = vrot.lane.b32.xlu0 %v270, 96
      %v281 = vpop.permute.xlu0 %280
      %283 = vrot.lane.b32.xlu0 %v270, 80
      %v284 = vpop.permute.xlu0 %283
      %286 = vrot.lane.b32.xlu0 %v270, 64
      %v287 = vpop.permute.xlu0 %286
      %289 = vrot.lane.b32.xlu0 %v270, 48
      %v290 = vpop.permute.xlu0 %289
      %292 = vrot.lane.b32.xlu0 %v270, 32
      %v293 = vpop.permute.xlu0 %292
      %295 = vrot.lane.b32.xlu0 %v270, 16
      %v296 = vpop.permute.xlu0 %295
      %299 = vrot.lane.b32.xlu0 %v272, 112
      %v300 = vpop.permute.xlu0 %299
      %302 = vrot.lane.b32.xlu0 %v272, 96
      %v303 = vpop.permute.xlu0 %302
      %305 = vrot.lane.b32.xlu0 %v272, 80
      %v306 = vpop.permute.xlu0 %305
      %308 = vrot.lane.b32.xlu0 %v272, 64
      %v309 = vpop.permute.xlu0 %308
      %311 = vrot.lane.b32.xlu0 %v272, 48
      %v312 = vpop.permute.xlu0 %311
      %314 = vrot.lane.b32.xlu0 %v272, 32
      %v315 = vpop.permute.xlu0 %314
      %317 = vrot.lane.b32.xlu0 %v272, 16
      %v318 = vpop.permute.xlu0 %317
      %v320 = vcombine.low %v270, %v281
      %v321 = vcombine.high %v270, %v281
      %v323 = vunpack.c.l.s4 1983009808
      %v324 = vunpack.c.0.s8 %v323
      %v325 = vlaneseq
      %v326 = vshrl.u32 %v325, 7
      %v327 = vsub.s32 %v324, %v326
      %v328 = vrot.slane %v320, %v327
      %v330 = vunpack.c.l.s4 1983009808
      %v331 = vunpack.c.0.s8 %v330
      %v332 = vlaneseq
      %v333 = vshrl.u32 %v332, 7
      %v334 = vsub.s32 %v331, %v333
      %v335 = vrot.slane %v321, %v334
      %v336 = vcombine.low %v278, %v284
      %v337 = vcombine.high %v278, %v284
      %v339 = vunpack.c.l.s4 1983009808
      %v340 = vunpack.c.0.s8 %v339
      %v341 = vlaneseq
      %v342 = vshrl.u32 %v341, 7
      %v343 = vsub.s32 %v340, %v342
      %v344 = vrot.slane %v336, %v343
      %v346 = vunpack.c.l.s4 1983009808
      %v347 = vunpack.c.0.s8 %v346
      %v348 = vlaneseq
      %v349 = vshrl.u32 %v348, 7
      %v350 = vsub.s32 %v347, %v349
      %v351 = vrot.slane %v337, %v350
      %v352 = vcombine.low %v287, %v293
      %v353 = vcombine.high %v287, %v293
      %v355 = vunpack.c.l.s4 1983009808
      %v356 = vunpack.c.0.s8 %v355
      %v357 = vlaneseq
      %v358 = vshrl.u32 %v357, 7
      %v359 = vsub.s32 %v356, %v358
      %v360 = vrot.slane %v352, %v359
      %v362 = vunpack.c.l.s4 1983009808
      %v363 = vunpack.c.0.s8 %v362
      %v364 = vlaneseq
      %v365 = vshrl.u32 %v364, 7
      %v366 = vsub.s32 %v363, %v365
      %v367 = vrot.slane %v353, %v366
      %v368 = vcombine.low %v290, %v296
      %v369 = vcombine.high %v290, %v296
      %v371 = vunpack.c.l.s4 1983009808
      %v372 = vunpack.c.0.s8 %v371
      %v373 = vlaneseq
      %v374 = vshrl.u32 %v373, 7
      %v375 = vsub.s32 %v372, %v374
      %v376 = vrot.slane %v368, %v375
      %v378 = vunpack.c.l.s4 1983009808
      %v379 = vunpack.c.0.s8 %v378
      %v380 = vlaneseq
      %v381 = vshrl.u32 %v380, 7
      %v382 = vsub.s32 %v379, %v381
      %v383 = vrot.slane %v369, %v382
      %v384 = vcombine.low %v328, %v344
      %v385 = vcombine.high %v328, %v344
      %v387 = vunpack.c.l.s4 1934713408
      %v388 = vunpack.c.0.s8 %v387
      %v389 = vlaneseq
      %v390 = vshrl.u32 %v389, 7
      %v391 = vsub.s32 %v388, %v390
      %v392 = vrot.slane %v384, %v391
      %v394 = vunpack.c.l.s4 1934713408
      %v395 = vunpack.c.0.s8 %v394
      %v396 = vlaneseq
      %v397 = vshrl.u32 %v396, 7
      %v398 = vsub.s32 %v395, %v397
      %v399 = vrot.slane %v385, %v398
      %v400 = vcombine.low %v335, %v351
      %v401 = vcombine.high %v335, %v351
      %v403 = vunpack.c.l.s4 1934713408
      %v404 = vunpack.c.0.s8 %v403
      %v405 = vlaneseq
      %v406 = vshrl.u32 %v405, 7
      %v407 = vsub.s32 %v404, %v406
      %v408 = vrot.slane %v400, %v407
      %v410 = vunpack.c.l.s4 1934713408
      %v411 = vunpack.c.0.s8 %v410
      %v412 = vlaneseq
      %v413 = vshrl.u32 %v412, 7
      %v414 = vsub.s32 %v411, %v413
      %v415 = vrot.slane %v401, %v414
      %v416 = vcombine.low %v360, %v376
      %v417 = vcombine.high %v360, %v376
      %v419 = vunpack.c.l.s4 1934713408
      %v420 = vunpack.c.0.s8 %v419
      %v421 = vlaneseq
      %v422 = vshrl.u32 %v421, 7
      %v423 = vsub.s32 %v420, %v422
      %v424 = vrot.slane %v416, %v423
      %v426 = vunpack.c.l.s4 1934713408
      %v427 = vunpack.c.0.s8 %v426
      %v428 = vlaneseq
      %v429 = vshrl.u32 %v428, 7
      %v430 = vsub.s32 %v427, %v429
      %v431 = vrot.slane %v417, %v430
      %v432 = vcombine.low %v367, %v383
      %v433 = vcombine.high %v367, %v383
      %v435 = vunpack.c.l.s4 1934713408
      %v436 = vunpack.c.0.s8 %v435
      %v437 = vlaneseq
      %v438 = vshrl.u32 %v437, 7
      %v439 = vsub.s32 %v436, %v438
      %v440 = vrot.slane %v432, %v439
      %v442 = vunpack.c.l.s4 1934713408
      %v443 = vunpack.c.0.s8 %v442
      %v444 = vlaneseq
      %v445 = vshrl.u32 %v444, 7
      %v446 = vsub.s32 %v443, %v445
      %v447 = vrot.slane %v433, %v446
      %v448 = vcombine.low %v392, %v424
      %v449 = vcombine.high %v392, %v424
      %v450 = vcombine.low %v399, %v431
      %v451 = vcombine.high %v399, %v431
      %v452 = vcombine.low %v408, %v440
      %v453 = vcombine.high %v408, %v440
      %v454 = vcombine.low %v415, %v447
      %v455 = vcombine.low %v272, %v303
      %v456 = vcombine.high %v272, %v303
      %v458 = vunpack.c.l.s4 1983009808
      %v459 = vunpack.c.0.s8 %v458
      %v460 = vlaneseq
      %v461 = vshrl.u32 %v460, 7
      %v462 = vsub.s32 %v459, %v461
      %v463 = vrot.slane %v455, %v462
      %v465 = vunpack.c.l.s4 1983009808
      %v466 = vunpack.c.0.s8 %v465
      %v467 = vlaneseq
      %v468 = vshrl.u32 %v467, 7
      %v469 = vsub.s32 %v466, %v468
      %v470 = vrot.slane %v456, %v469
      %v471 = vcombine.low %v300, %v306
      %v472 = vcombine.high %v300, %v306
      %v474 = vunpack.c.l.s4 1983009808
      %v475 = vunpack.c.0.s8 %v474
      %v476 = vlaneseq
      %v477 = vshrl.u32 %v476, 7
      %v478 = vsub.s32 %v475, %v477
      %v479 = vrot.slane %v471, %v478
      %v481 = vunpack.c.l.s4 1983009808
      %v482 = vunpack.c.0.s8 %v481
      %v483 = vlaneseq
      %v484 = vshrl.u32 %v483, 7
      %v485 = vsub.s32 %v482, %v484
      %v486 = vrot.slane %v472, %v485
      %v487 = vcombine.low %v309, %v315
      %v488 = vcombine.high %v309, %v315
      %v490 = vunpack.c.l.s4 1983009808
      %v491 = vunpack.c.0.s8 %v490
      %v492 = vlaneseq
      %v493 = vshrl.u32 %v492, 7
      %v494 = vsub.s32 %v491, %v493
      %v495 = vrot.slane %v487, %v494
      %v497 = vunpack.c.l.s4 1983009808
      %v498 = vunpack.c.0.s8 %v497
      %v499 = vlaneseq
      %v500 = vshrl.u32 %v499, 7
      %v501 = vsub.s32 %v498, %v500
      %v502 = vrot.slane %v488, %v501
      %v503 = vcombine.low %v312, %v318
      %v504 = vcombine.high %v312, %v318
      %v506 = vunpack.c.l.s4 1983009808
      %v507 = vunpack.c.0.s8 %v506
      %v508 = vlaneseq
      %v509 = vshrl.u32 %v508, 7
      %v510 = vsub.s32 %v507, %v509
      %v511 = vrot.slane %v503, %v510
      %v513 = vunpack.c.l.s4 1983009808
      %v514 = vunpack.c.0.s8 %v513
      %v515 = vlaneseq
      %v516 = vshrl.u32 %v515, 7
      %v517 = vsub.s32 %v514, %v516
      %v518 = vrot.slane %v504, %v517
      %v519 = vcombine.low %v463, %v479
      %v520 = vcombine.high %v463, %v479
      %v522 = vunpack.c.l.s4 1934713408
      %v523 = vunpack.c.0.s8 %v522
      %v524 = vlaneseq
      %v525 = vshrl.u32 %v524, 7
      %v526 = vsub.s32 %v523, %v525
      %v527 = vrot.slane %v519, %v526
      %v529 = vunpack.c.l.s4 1934713408
      %v530 = vunpack.c.0.s8 %v529
      %v531 = vlaneseq
      %v532 = vshrl.u32 %v531, 7
      %v533 = vsub.s32 %v530, %v532
      %v534 = vrot.slane %v520, %v533
      %v535 = vcombine.low %v470, %v486
      %v536 = vcombine.high %v470, %v486
      %v538 = vunpack.c.l.s4 1934713408
      %v539 = vunpack.c.0.s8 %v538
      %v540 = vlaneseq
      %v541 = vshrl.u32 %v540, 7
      %v542 = vsub.s32 %v539, %v541
      %v543 = vrot.slane %v535, %v542
      %v545 = vunpack.c.l.s4 1934713408
      %v546 = vunpack.c.0.s8 %v545
      %v547 = vlaneseq
      %v548 = vshrl.u32 %v547, 7
      %v549 = vsub.s32 %v546, %v548
      %v550 = vrot.slane %v536, %v549
      %v551 = vcombine.low %v495, %v511
      %v552 = vcombine.high %v495, %v511
      %v554 = vunpack.c.l.s4 1934713408
      %v555 = vunpack.c.0.s8 %v554
      %v556 = vlaneseq
      %v557 = vshrl.u32 %v556, 7
      %v558 = vsub.s32 %v555, %v557
      %v559 = vrot.slane %v551, %v558
      %v561 = vunpack.c.l.s4 1934713408
      %v562 = vunpack.c.0.s8 %v561
      %v563 = vlaneseq
      %v564 = vshrl.u32 %v563, 7
      %v565 = vsub.s32 %v562, %v564
      %v566 = vrot.slane %v552, %v565
      %v567 = vcombine.low %v502, %v518
      %v568 = vcombine.high %v502, %v518
      %v570 = vunpack.c.l.s4 1934713408
      %v571 = vunpack.c.0.s8 %v570
      %v572 = vlaneseq
      %v573 = vshrl.u32 %v572, 7
      %v574 = vsub.s32 %v571, %v573
      %v575 = vrot.slane %v567, %v574
      %v577 = vunpack.c.l.s4 1934713408
      %v578 = vunpack.c.0.s8 %v577
      %v579 = vlaneseq
      %v580 = vshrl.u32 %v579, 7
      %v581 = vsub.s32 %v578, %v580
      %v582 = vrot.slane %v568, %v581
      %v583 = vcombine.low %v527, %v559
      %v584 = vcombine.high %v527, %v559
      %v585 = vcombine.low %v534, %v566
      %v586 = vcombine.high %v534, %v566
      %v587 = vcombine.low %v543, %v575
      %v588 = vcombine.high %v543, %v575
      %v589 = vcombine.low %v550, %v582
      %v590 = vpack.c.bf16 %v583, %v448
      %v591 = vpack.c.bf16 %v584, %v449
      %v592 = vpack.c.bf16 %v585, %v450
      %v593 = vpack.c.bf16 %v586, %v451
      %v594 = vpack.c.bf16 %v587, %v452
      %v595 = vpack.c.bf16 %v588, %v453
      %v596 = vpack.c.bf16 %v589, %v454
      %v597 = vld [vmem:[%s205] sm:$0xf]
      %v599 = vsel %vm231, %v597, 0
      %601 = vmatprep.subr.bf16.mxu0 0
      %602 = vmatpush1.bf16.msra.mxu0 %v590
      %603 = vmatprep.subr.bf16.mxu0 0
      %604 = vmatpush1.bf16.msra.mxu0 0
      %605 = vmatprep.subr.bf16.mxu0 0
      %606 = vmatpush1.bf16.msra.mxu0 0
      %607 = vmatprep.subr.bf16.mxu0 0
      %608 = vmatpush1.bf16.msra.mxu0 0
      %609 = vmatprep.subr.bf16.mxu0 0
      %610 = vmatpush1.bf16.msra.mxu0 0
      %611 = vmatprep.subr.bf16.mxu0 0
      %612 = vmatpush1.bf16.msra.mxu0 0
      %613 = vmatprep.subr.bf16.mxu0 0
      %614 = vmatpush1.bf16.msra.mxu0 0
      %615 = vmatprep.subr.bf16.mxu0 0
      %616 = vmatpush1.bf16.msra.mxu0 0
      %617 = vmatprep.subr.bf16.mxu0 0
      %618 = vmatpush1.bf16.msra.mxu0 0
      %619 = vmatprep.subr.bf16.mxu0 0
      %620 = vmatpush1.bf16.msra.mxu0 0
      %621 = vmatprep.subr.bf16.mxu0 0
      %622 = vmatpush1.bf16.msra.mxu0 0
      %623 = vmatprep.subr.bf16.mxu0 0
      %624 = vmatpush1.bf16.msra.mxu0 0
      %625 = vmatprep.subr.bf16.mxu0 0
      %626 = vmatpush1.bf16.msra.mxu0 0
      %627 = vmatprep.subr.bf16.mxu0 0
      %628 = vmatpush1.bf16.msra.mxu0 0
      %629 = vmatprep.subr.bf16.mxu0 0
      %630 = vmatpush1.bf16.msra.mxu0 0
      %631 = vmatprep.subr.bf16.mxu0 0
      %632 = vmatpush1.bf16.msra.mxu0 0
      %633 = vmatprep.mubr.bf16.mxu0 0
      %634 = vmatmul.mubr.bf16.gmra.mrb[0].mxu0 %v599
      %v635 = vpop.f32.mrb[0].mxu0
      %v636 = vadd.f32 0.0, %v635
      %v637 = vpop.f32.mrb[0].mxu0
      %v638 = vpop.f32.mrb[0].mxu0
      %v639 = vpop.f32.mrb[0].mxu0
      %640 = vdwg.mxu0
      %641 = vmatprep.subr.bf16.mxu0 0
      %642 = vmatpush1.bf16.msra.mxu0 %v591
      %643 = vmatprep.subr.bf16.mxu0 0
      %644 = vmatpush1.bf16.msra.mxu0 0
      %645 = vmatprep.subr.bf16.mxu0 0
      %646 = vmatpush1.bf16.msra.mxu0 0
      %647 = vmatprep.subr.bf16.mxu0 0
      %648 = vmatpush1.bf16.msra.mxu0 0
      %649 = vmatprep.subr.bf16.mxu0 0
      %650 = vmatpush1.bf16.msra.mxu0 0
      %651 = vmatprep.subr.bf16.mxu0 0
      %652 = vmatpush1.bf16.msra.mxu0 0
      %653 = vmatprep.subr.bf16.mxu0 0
      %654 = vmatpush1.bf16.msra.mxu0 0
      %655 = vmatprep.subr.bf16.mxu0 0
      %656 = vmatpush1.bf16.msra.mxu0 0
      %657 = vmatprep.subr.bf16.mxu0 0
      %658 = vmatpush1.bf16.msra.mxu0 0
      %659 = vmatprep.subr.bf16.mxu0 0
      %660 = vmatpush1.bf16.msra.mxu0 0
      %661 = vmatprep.subr.bf16.mxu0 0
      %662 = vmatpush1.bf16.msra.mxu0 0
      %663 = vmatprep.subr.bf16.mxu0 0
      %664 = vmatpush1.bf16.msra.mxu0 0
      %665 = vmatprep.subr.bf16.mxu0 0
      %666 = vmatpush1.bf16.msra.mxu0 0
      %667 = vmatprep.subr.bf16.mxu0 0
      %668 = vmatpush1.bf16.msra.mxu0 0
      %669 = vmatprep.subr.bf16.mxu0 0
      %670 = vmatpush1.bf16.msra.mxu0 0
      %671 = vmatprep.subr.bf16.mxu0 0
      %672 = vmatpush1.bf16.msra.mxu0 0
      %673 = vmatprep.mubr.bf16.mxu0 0
      %674 = vmatmul.mubr.bf16.gmra.mrb[0].mxu0 %v599
      %v675 = vpop.f32.mrb[0].mxu0
      %v676 = vadd.f32 0.0, %v675
      %v677 = vpop.f32.mrb[0].mxu0
      %v678 = vpop.f32.mrb[0].mxu0
      %v679 = vpop.f32.mrb[0].mxu0
      %680 = vdwg.mxu0
      %681 = vmatprep.subr.bf16.mxu0 0
      %682 = vmatpush1.bf16.msra.mxu0 %v592
      %683 = vmatprep.subr.bf16.mxu0 0
      %684 = vmatpush1.bf16.msra.mxu0 0
      %685 = vmatprep.subr.bf16.mxu0 0
      %686 = vmatpush1.bf16.msra.mxu0 0
      %687 = vmatprep.subr.bf16.mxu0 0
      %688 = vmatpush1.bf16.msra.mxu0 0
      %689 = vmatprep.subr.bf16.mxu0 0
      %690 = vmatpush1.bf16.msra.mxu0 0
      %691 = vmatprep.subr.bf16.mxu0 0
      %692 = vmatpush1.bf16.msra.mxu0 0
      %693 = vmatprep.subr.bf16.mxu0 0
      %694 = vmatpush1.bf16.msra.mxu0 0
      %695 = vmatprep.subr.bf16.mxu0 0
      %696 = vmatpush1.bf16.msra.mxu0 0
      %697 = vmatprep.subr.bf16.mxu0 0
      %698 = vmatpush1.bf16.msra.mxu0 0
      %699 = vmatprep.subr.bf16.mxu0 0
      %700 = vmatpush1.bf16.msra.mxu0 0
      %701 = vmatprep.subr.bf16.mxu0 0
      %702 = vmatpush1.bf16.msra.mxu0 0
      %703 = vmatprep.subr.bf16.mxu0 0
      %704 = vmatpush1.bf16.msra.mxu0 0
      %705 = vmatprep.subr.bf16.mxu0 0
      %706 = vmatpush1.bf16.msra.mxu0 0
      %707 = vmatprep.subr.bf16.mxu0 0
      %708 = vmatpush1.bf16.msra.mxu0 0
      %709 = vmatprep.subr.bf16.mxu0 0
      %710 = vmatpush1.bf16.msra.mxu0 0
      %711 = vmatprep.subr.bf16.mxu0 0
      %712 = vmatpush1.bf16.msra.mxu0 0
      %713 = vmatprep.mubr.bf16.mxu0 0
      %714 = vmatmul.mubr.bf16.gmra.mrb[0].mxu0 %v599
      %v715 = vpop.f32.mrb[0].mxu0
      %v716 = vadd.f32 0.0, %v715
      %v717 = vpop.f32.mrb[0].mxu0
      %v718 = vpop.f32.mrb[0].mxu0
      %v719 = vpop.f32.mrb[0].mxu0
      %720 = vdwg.mxu0
      %721 = vmatprep.subr.bf16.mxu0 0
      %722 = vmatpush1.bf16.msra.mxu0 %v593
      %723 = vmatprep.subr.bf16.mxu0 0
      %724 = vmatpush1.bf16.msra.mxu0 0
      %725 = vmatprep.subr.bf16.mxu0 0
      %726 = vmatpush1.bf16.msra.mxu0 0
      %727 = vmatprep.subr.bf16.mxu0 0
      %728 = vmatpush1.bf16.msra.mxu0 0
      %729 = vmatprep.subr.bf16.mxu0 0
      %730 = vmatpush1.bf16.msra.mxu0 0
      %731 = vmatprep.subr.bf16.mxu0 0
      %732 = vmatpush1.bf16.msra.mxu0 0
      %733 = vmatprep.subr.bf16.mxu0 0
      %734 = vmatpush1.bf16.msra.mxu0 0
      %735 = vmatprep.subr.bf16.mxu0 0
      %736 = vmatpush1.bf16.msra.mxu0 0
      %737 = vmatprep.subr.bf16.mxu0 0
      %738 = vmatpush1.bf16.msra.mxu0 0
      %739 = vmatprep.subr.bf16.mxu0 0
      %740 = vmatpush1.bf16.msra.mxu0 0
      %741 = vmatprep.subr.bf16.mxu0 0
      %742 = vmatpush1.bf16.msra.mxu0 0
      %743 = vmatprep.subr.bf16.mxu0 0
      %744 = vmatpush1.bf16.msra.mxu0 0
      %745 = vmatprep.subr.bf16.mxu0 0
      %746 = vmatpush1.bf16.msra.mxu0 0
      %747 = vmatprep.subr.bf16.mxu0 0
      %748 = vmatpush1.bf16.msra.mxu0 0
      %749 = vmatprep.subr.bf16.mxu0 0
      %750 = vmatpush1.bf16.msra.mxu0 0
      %751 = vmatprep.subr.bf16.mxu0 0
      %752 = vmatpush1.bf16.msra.mxu0 0
      %753 = vmatprep.mubr.bf16.mxu0 0
      %754 = vmatmul.mubr.bf16.gmra.mrb[0].mxu0 %v599
      %v755 = vpop.f32.mrb[0].mxu0
      %v756 = vadd.f32 0.0, %v755
      %v757 = vpop.f32.mrb[0].mxu0
      %v758 = vpop.f32.mrb[0].mxu0
      %v759 = vpop.f32.mrb[0].mxu0
      %760 = vdwg.mxu0
      %761 = vmatprep.subr.bf16.mxu0 0
      %762 = vmatpush1.bf16.msra.mxu0 %v594
      %763 = vmatprep.subr.bf16.mxu0 0
      %764 = vmatpush1.bf16.msra.mxu0 0
      %765 = vmatprep.subr.bf16.mxu0 0
      %766 = vmatpush1.bf16.msra.mxu0 0
      %767 = vmatprep.subr.bf16.mxu0 0
      %768 = vmatpush1.bf16.msra.mxu0 0
      %769 = vmatprep.subr.bf16.mxu0 0
      %770 = vmatpush1.bf16.msra.mxu0 0
      %771 = vmatprep.subr.bf16.mxu0 0
      %772 = vmatpush1.bf16.msra.mxu0 0
      %773 = vmatprep.subr.bf16.mxu0 0
      %774 = vmatpush1.bf16.msra.mxu0 0
      %775 = vmatprep.subr.bf16.mxu0 0
      %776 = vmatpush1.bf16.msra.mxu0 0
      %777 = vmatprep.subr.bf16.mxu0 0
      %778 = vmatpush1.bf16.msra.mxu0 0
      %779 = vmatprep.subr.bf16.mxu0 0
      %780 = vmatpush1.bf16.msra.mxu0 0
      %781 = vmatprep.subr.bf16.mxu0 0
      %782 = vmatpush1.bf16.msra.mxu0 0
      %783 = vmatprep.subr.bf16.mxu0 0
      %784 = vmatpush1.bf16.msra.mxu0 0
      %785 = vmatprep.subr.bf16.mxu0 0
      %786 = vmatpush1.bf16.msra.mxu0 0
      %787 = vmatprep.subr.bf16.mxu0 0
      %788 = vmatpush1.bf16.msra.mxu0 0
      %789 = vmatprep.subr.bf16.mxu0 0
      %790 = vmatpush1.bf16.msra.mxu0 0
      %791 = vmatprep.subr.bf16.mxu0 0
      %792 = vmatpush1.bf16.msra.mxu0 0
      %793 = vmatprep.mubr.bf16.mxu0 0
      %794 = vmatmul.mubr.bf16.gmra.mrb[0].mxu0 %v599
      %v795 = vpop.f32.mrb[0].mxu0
      %v796 = vadd.f32 0.0, %v795
      %v797 = vpop.f32.mrb[0].mxu0
      %v798 = vpop.f32.mrb[0].mxu0
      %v799 = vpop.f32.mrb[0].mxu0
      %800 = vdwg.mxu0
      %801 = vmatprep.subr.bf16.mxu0 0
      %802 = vmatpush1.bf16.msra.mxu0 %v595
      %803 = vmatprep.subr.bf16.mxu0 0
      %804 = vmatpush1.bf16.msra.mxu0 0
      %805 = vmatprep.subr.bf16.mxu0 0
      %806 = vmatpush1.bf16.msra.mxu0 0
      %807 = vmatprep.subr.bf16.mxu0 0
      %808 = vmatpush1.bf16.msra.mxu0 0
      %809 = vmatprep.subr.bf16.mxu0 0
      %810 = vmatpush1.bf16.msra.mxu0 0
      %811 = vmatprep.subr.bf16.mxu0 0
      %812 = vmatpush1.bf16.msra.mxu0 0
      %813 = vmatprep.subr.bf16.mxu0 0
      %814 = vmatpush1.bf16.msra.mxu0 0
      %815 = vmatprep.subr.bf16.mxu0 0
      %816 = vmatpush1.bf16.msra.mxu0 0
      %817 = vmatprep.subr.bf16.mxu0 0
      %818 = vmatpush1.bf16.msra.mxu0 0
      %819 = vmatprep.subr.bf16.mxu0 0
      %820 = vmatpush1.bf16.msra.mxu0 0
      %821 = vmatprep.subr.bf16.mxu0 0
      %822 = vmatpush1.bf16.msra.mxu0 0
      %823 = vmatprep.subr.bf16.mxu0 0
      %824 = vmatpush1.bf16.msra.mxu0 0
      %825 = vmatprep.subr.bf16.mxu0 0
      %826 = vmatpush1.bf16.msra.mxu0 0
      %827 = vmatprep.subr.bf16.mxu0 0
      %828 = vmatpush1.bf16.msra.mxu0 0
      %829 = vmatprep.subr.bf16.mxu0 0
      %830 = vmatpush1.bf16.msra.mxu0 0
      %831 = vmatprep.subr.bf16.mxu0 0
      %832 = vmatpush1.bf16.msra.mxu0 0
      %833 = vmatprep.mubr.bf16.mxu0 0
      %834 = vmatmul.mubr.bf16.gmra.mrb[0].mxu0 %v599
      %v835 = vpop.f32.mrb[0].mxu0
      %v836 = vadd.f32 0.0, %v835
      %v837 = vpop.f32.mrb[0].mxu0
      %v838 = vpop.f32.mrb[0].mxu0
      %v839 = vpop.f32.mrb[0].mxu0
      %840 = vdwg.mxu0
      %841 = vmatprep.subr.bf16.mxu0 0
      %842 = vmatpush1.bf16.msra.mxu0 %v596
      %843 = vmatprep.subr.bf16.mxu0 0
      %844 = vmatpush1.bf16.msra.mxu0 0
      %845 = vmatprep.subr.bf16.mxu0 0
      %846 = vmatpush1.bf16.msra.mxu0 0
      %847 = vmatprep.subr.bf16.mxu0 0
      %848 = vmatpush1.bf16.msra.mxu0 0
      %849 = vmatprep.subr.bf16.mxu0 0
      %850 = vmatpush1.bf16.msra.mxu0 0
      %851 = vmatprep.subr.bf16.mxu0 0
      %852 = vmatpush1.bf16.msra.mxu0 0
      %853 = vmatprep.subr.bf16.mxu0 0
      %854 = vmatpush1.bf16.msra.mxu0 0
      %855 = vmatprep.subr.bf16.mxu0 0
      %856 = vmatpush1.bf16.msra.mxu0 0
      %857 = vmatprep.subr.bf16.mxu0 0
      %858 = vmatpush1.bf16.msra.mxu0 0
      %859 = vmatprep.subr.bf16.mxu0 0
      %860 = vmatpush1.bf16.msra.mxu0 0
      %861 = vmatprep.subr.bf16.mxu0 0
      %862 = vmatpush1.bf16.msra.mxu0 0
      %863 = vmatprep.subr.bf16.mxu0 0
      %864 = vmatpush1.bf16.msra.mxu0 0
      %865 = vmatprep.subr.bf16.mxu0 0
      %866 = vmatpush1.bf16.msra.mxu0 0
      %867 = vmatprep.subr.bf16.mxu0 0
      %868 = vmatpush1.bf16.msra.mxu0 0
      %869 = vmatprep.subr.bf16.mxu0 0
      %870 = vmatpush1.bf16.msra.mxu0 0
      %871 = vmatprep.subr.bf16.mxu0 0
      %872 = vmatpush1.bf16.msra.mxu0 0
      %873 = vmatprep.mubr.bf16.mxu0 0
      %874 = vmatmul.mubr.bf16.gmra.mrb[0].mxu0 %v599
      %v875 = vpop.f32.mrb[0].mxu0
      %v876 = vadd.f32 0.0, %v875
      %v877 = vpop.f32.mrb[0].mxu0
      %v878 = vpop.f32.mrb[0].mxu0
      %v879 = vpop.f32.mrb[0].mxu0
      %880 = vdwg.mxu0
      %v881 = vcombine.low %v636, %v716
      %v882 = vcombine.high %v636, %v716
      %v884 = vunpack.c.l.s4 1983009808
      %v885 = vunpack.c.0.s8 %v884
      %v886 = vlaneseq
      %v887 = vshrl.u32 %v886, 7
      %v888 = vsub.s32 %v885, %v887
      %v889 = vrot.slane %v881, %v888
      %v891 = vunpack.c.l.s4 1983009808
      %v892 = vunpack.c.0.s8 %v891
      %v893 = vlaneseq
      %v894 = vshrl.u32 %v893, 7
      %v895 = vsub.s32 %v892, %v894
      %v896 = vrot.slane %v882, %v895
      %v897 = vcombine.low %v676, %v756
      %v898 = vcombine.high %v676, %v756
      %v900 = vunpack.c.l.s4 1983009808
      %v901 = vunpack.c.0.s8 %v900
      %v902 = vlaneseq
      %v903 = vshrl.u32 %v902, 7
      %v904 = vsub.s32 %v901, %v903
      %v905 = vrot.slane %v897, %v904
      %v907 = vunpack.c.l.s4 1983009808
      %v908 = vunpack.c.0.s8 %v907
      %v909 = vlaneseq
      %v910 = vshrl.u32 %v909, 7
      %v911 = vsub.s32 %v908, %v910
      %v912 = vrot.slane %v898, %v911
      %v913 = vcombine.low %v796, %v876
      %v914 = vcombine.high %v796, %v876
      %v916 = vunpack.c.l.s4 1983009808
      %v917 = vunpack.c.0.s8 %v916
      %v918 = vlaneseq
      %v919 = vshrl.u32 %v918, 7
      %v920 = vsub.s32 %v917, %v919
      %v921 = vrot.slane %v913, %v920
      %v923 = vunpack.c.l.s4 1983009808
      %v924 = vunpack.c.0.s8 %v923
      %v925 = vlaneseq
      %v926 = vshrl.u32 %v925, 7
      %v927 = vsub.s32 %v924, %v926
      %v928 = vrot.slane %v914, %v927
      %v929 = vcombine.high %v836, 0.0
      %v931 = vunpack.c.l.s4 1983009808
      %v932 = vunpack.c.0.s8 %v931
      %v933 = vlaneseq
      %v934 = vshrl.u32 %v933, 7
      %v935 = vsub.s32 %v932, %v934
      %v936 = vrot.slane %v836, %v935
      %v938 = vunpack.c.l.s4 1983009808
      %v939 = vunpack.c.0.s8 %v938
      %v940 = vlaneseq
      %v941 = vshrl.u32 %v940, 7
      %v942 = vsub.s32 %v939, %v941
      %v943 = vrot.slane %v929, %v942
      %v944 = vcombine.low %v889, %v905
      %v945 = vcombine.high %v889, %v905
      %v947 = vunpack.c.l.s4 1934713408
      %v948 = vunpack.c.0.s8 %v947
      %v949 = vlaneseq
      %v950 = vshrl.u32 %v949, 7
      %v951 = vsub.s32 %v948, %v950
      %v952 = vrot.slane %v944, %v951
      %v954 = vunpack.c.l.s4 1934713408
      %v955 = vunpack.c.0.s8 %v954
      %v956 = vlaneseq
      %v957 = vshrl.u32 %v956, 7
      %v958 = vsub.s32 %v955, %v957
      %v959 = vrot.slane %v945, %v958
      %v960 = vcombine.low %v896, %v912
      %v961 = vcombine.high %v896, %v912
      %v963 = vunpack.c.l.s4 1934713408
      %v964 = vunpack.c.0.s8 %v963
      %v965 = vlaneseq
      %v966 = vshrl.u32 %v965, 7
      %v967 = vsub.s32 %v964, %v966
      %v968 = vrot.slane %v960, %v967
      %v970 = vunpack.c.l.s4 1934713408
      %v971 = vunpack.c.0.s8 %v970
      %v972 = vlaneseq
      %v973 = vshrl.u32 %v972, 7
      %v974 = vsub.s32 %v971, %v973
      %v975 = vrot.slane %v961, %v974
      %v976 = vcombine.low %v921, %v936
      %v977 = vcombine.high %v921, %v936
      %v979 = vunpack.c.l.s4 1934713408
      %v980 = vunpack.c.0.s8 %v979
      %v981 = vlaneseq
      %v982 = vshrl.u32 %v981, 7
      %v983 = vsub.s32 %v980, %v982
      %v984 = vrot.slane %v976, %v983
      %v986 = vunpack.c.l.s4 1934713408
      %v987 = vunpack.c.0.s8 %v986
      %v988 = vlaneseq
      %v989 = vshrl.u32 %v988, 7
      %v990 = vsub.s32 %v987, %v989
      %v991 = vrot.slane %v977, %v990
      %v992 = vcombine.low %v928, %v943
      %v993 = vcombine.high %v928, %v943
      %v995 = vunpack.c.l.s4 1934713408
      %v996 = vunpack.c.0.s8 %v995
      %v997 = vlaneseq
      %v998 = vshrl.u32 %v997, 7
      %v999 = vsub.s32 %v996, %v998
      %v1000 = vrot.slane %v992, %v999
      %v1002 = vunpack.c.l.s4 1934713408
      %v1003 = vunpack.c.0.s8 %v1002
      %v1004 = vlaneseq
      %v1005 = vshrl.u32 %v1004, 7
      %v1006 = vsub.s32 %v1003, %v1005
      %v1007 = vrot.slane %v993, %v1006
      %v1008 = vcombine.low %v952, %v984
      %v1009 = vcombine.high %v952, %v984
      %v1010 = vcombine.low %v959, %v991
      %v1011 = vcombine.high %v959, %v991
      %v1012 = vcombine.low %v968, %v1000
      %v1013 = vcombine.high %v968, %v1000
      %v1014 = vcombine.low %v975, %v1007
      %1016 = vrot.lane.b32.xlu0 %v1009, 16
      %v1017 = vpop.permute.xlu0 %1016
      %1020 = vrot.lane.b32.xlu0 %v1010, 32
      %v1021 = vpop.permute.xlu0 %1020
      %1024 = vrot.lane.b32.xlu0 %v1011, 48
      %v1025 = vpop.permute.xlu0 %1024
      %1028 = vrot.lane.b32.xlu0 %v1012, 64
      %v1029 = vpop.permute.xlu0 %1028
      %1032 = vrot.lane.b32.xlu0 %v1013, 80
      %v1033 = vpop.permute.xlu0 %1032
      %1036 = vrot.lane.b32.xlu0 %v1014, 96
      %v1037 = vpop.permute.xlu0 %1036
      %v1039 = vsel %vm231, %v1008, %v1017
      %vm1040 = vcmask 261120
      %v1041 = vsel %vm1040, %v1039, %v1021
      %vm1042 = vcmask 392192
      %v1043 = vsel %vm1042, %v1041, %v1025
      %vm1044 = vcmask 523264
      %v1045 = vsel %vm1044, %v1043, %v1029
      %vm1046 = vcmask 654336
      %v1047 = vsel %vm1046, %v1045, %v1033
      %vm1048 = vcmask 785408
      %v1049 = vsel %vm1048, %v1047, %v1037
      %vm1050 = vcmask 916480
      %v1051 = vsel %vm1050, %v1049, 0.0
      %v1052 = vpack.c.bf16 %v1051, %v1051
      %vm1053 = vcmask 1043456
      %vm1054 = vsmask.f32 3328
      %vm1055 = vmand %vm1053, %vm1054
      %v1056 = vld [vmem:[%s216] sm:$0xf]
      %v1057 = vsel %vm1055, %v1052, %v1056
      %1058 = vst [vmem:[%s216] sm:$0xf] %v1057
      %p1059 = scmp.lt.s32.totalorder %s21, 127
      %s1060 = scalar_select %p1059, %s21, 127
      %s1061 = smul.addr %s1060, 4
      %s1062 = scalar_lea.vmem %s4, %s1061
      // Predicated region
      $region33: #{tpu_custom_call.1} parent=31 // pred_check
        %p1063 = pneg %p119
      $region34: #{tpu_custom_call.1} parent=31 // pred_check_branch
        %1065 = sbr.rel (%p1063) target = $region36
      $region35: #{tpu_custom_call.1} parent=31 // pred_region
        _
      $region36: #{tpu_custom_call.1} parent=31 // pred_fallthru
        _
    $region32: #{tpu_custom_call.1} parent=5 // pred_fallthru
      _
    %p1066 = scmp.le.s32.totalorder 2, %s16
    // Predicated region
    $region37: #{tpu_custom_call.1} parent=5 // pred_check
      %p1067 = pneg %p1066
    $region38: #{tpu_custom_call.1} parent=5 // pred_check_branch
      %1069 = sbr.rel (%p1067) target = $region40
    $region39: #{tpu_custom_call.1} parent=5 // pred_region
      %s1070 = ssub.s32 %s16, 2
      // Predicated region
      $region41: #{tpu_custom_call.1} parent=39 // pred_check
        %p1071 = pneg %p125
      $region42: #{tpu_custom_call.1} parent=39 // pred_check_branch
        %1073 = sbr.rel (%p1071) target = $region44
      $region43: #{tpu_custom_call.1} parent=39 // pred_region
        %p1074 = scmp.lt.s32.totalorder %s22, 127
        %s1075 = scalar_select %p1074, %s22, 127
        %s1076 = smul.addr %s1075, 4
        %s1077 = scalar_lea.vmem %s4, %s1076
      $region44: #{tpu_custom_call.1} parent=39 // pred_fallthru
        _
    $region40: #{tpu_custom_call.1} parent=5 // pred_fallthru
      _
  $region6: #{tpu_custom_call.1} parent=0 // loop_footer
    %s20 = sadd.s32 1, %s16
  $region7: #{tpu_custom_call.1} parent=0 // loop_footer_branch
    %15 = sbr.rel target = $region3
  $region8: #{tpu_custom_call.1} parent=0 // loop_exit
    _

</llo_original>
